<compile_context>
chip_gen: v7x
topology: tpu7x:2x2x1
jax: 0.10.0
libtpu: 0.0.40
codegen_flags: <defaults>
</compile_context>

<pallas_src>
import functools

import jax
import jax.numpy as jnp
from jax.experimental import pallas as pl
from jax.experimental.pallas import tpu as pltpu

_TARGET_TILE_BYTES = 4 * 1024 * 1024   # ~4 MiB per buffer (Pallas double-buffers)
_VMEM_LIMIT_BYTES = 32 * 1024 * 1024   # explicit scoped-VMEM limit, safe on v5e/v6e/v7x
_MAX_LANE_WIDTH = 8192                 # lane-dense slab width cap (multiple of 128)


# --------------------------------------------------------------------------
# Kernels
# --------------------------------------------------------------------------
def _copy_kernel(x_ref, o_ref):
    """Identity: straight lane-dense tile copy."""
    o_ref[...] = x_ref[...]


def _sliding_max_kernel(x_ref, o_ref, *, kernel_size: int, l_dense: int):
    """Dense sliding max over the last axis (window = kernel_size, stride 1).

    Every window element k is a *contiguous* static slice of the ref, so the
    loads stay on the load unit (no lane-strided gathers / XLU shuffles).
    Stride > 1 subsampling is done by the wrapper outside the kernel.
    """
    acc = x_ref[:, pl.ds(0, l_dense)]
    for k in range(1, kernel_size):
        acc = jnp.maximum(acc, x_ref[:, pl.ds(k, l_dense)])
    o_ref[...] = acc.astype(o_ref.dtype)


# --------------------------------------------------------------------------
# Tiling helpers
# --------------------------------------------------------------------------
def _sublane_align(itemsize: int) -> int:
    """Sublane alignment by dtype: 8 for 32-bit, 16 for bf16, 32 for int8/fp8."""
    return max(8, 32 // max(1, itemsize))


def _largest_aligned_divisor(n: int, align: int, cap: int) -> int:
    """Largest multiple of `align` that divides n and is <= cap.

    Falls back to n itself (full-dimension block, always legal) when n is not
    a multiple of `align`.
    """
    if n % align != 0:
        return n
    cap = max(align, min(n, (cap // align) * align))
    best = align
    for cand in range(align, cap + 1, align):
        if n % cand == 0:
            best = cand
    return best


def _pick_lane_width(total: int, align_r: int, itemsize: int) -> int:
    """Largest W (multiple of 128, W | total, W <= cap), preferring W such that
    total // W is sublane-aligned so the row axis can be tiled."""
    w_cap = min(_MAX_LANE_WIDTH, max(128, _TARGET_TILE_BYTES // (align_r * itemsize)))
    w_cap = (w_cap // 128) * 128
    best = None
    for w in range(w_cap, 127, -128):
        if total % w == 0:
            if best is None:
                best = w
            if (total // w) % align_r == 0:
                return w
    return best if best is not None else 128


def _pick_row_tile(rows: int, row_bytes: int, align_r: int) -> int:
    # TODO(synk): gate a forced >=2-block split on core count (v7x dual-TC)
    # via pltpu.get_tpu_info(); natural ~4 MiB tiling already yields multiple
    # parallel blocks for any array large enough for it to matter.
    row_cap = max(align_r, _TARGET_TILE_BYTES // max(1, row_bytes))
    return _largest_aligned_divisor(rows, align_r, row_cap)


# --------------------------------------------------------------------------
# Identity (kernel_size == 1) materialized-copy path
# --------------------------------------------------------------------------
def _identity_copy(x: jax.Array) -> jax.Array:
    shape = x.shape
    dtype = x.dtype
    itemsize = jnp.dtype(dtype).itemsize
    total = 1
    for d in shape:
        total *= int(d)
    align_r = _sublane_align(itemsize)

    if total % 128 == 0:
        # Lane-dense slab: (rows, W) with W a large multiple of 128.
        w = _pick_lane_width(total, align_r, itemsize)
        rows = total // w
    else:
        # Fallback: keep the original last dim as lanes (masked stores OK here).
        w = int(shape[-1])
        rows = total // w

    x2 = x.reshape(rows, w)                      # wrapper-side layout plumbing
    tile_r = _pick_row_tile(rows, w * itemsize, align_r)
    grid = (rows // tile_r,)

    cost = pl.CostEstimate(
        flops=0, transcendentals=0, bytes_accessed=2 * total * itemsize)

    out2 = pl.pallas_call(
        _copy_kernel,
        out_shape=jax.ShapeDtypeStruct((rows, w), dtype),
        grid_spec=pltpu.PrefetchScalarGridSpec(
            num_scalar_prefetch=0,
            grid=grid,
            in_specs=[pl.BlockSpec((tile_r, w), lambda i: (i, 0))],
            out_specs=pl.BlockSpec((tile_r, w), lambda i: (i, 0)),
        ),
        compiler_params=pltpu.CompilerParams(
            dimension_semantics=("parallel",),
            vmem_limit_bytes=_VMEM_LIMIT_BYTES),
        cost_estimate=cost,
    )(x2)
    return out2.reshape(shape)


# --------------------------------------------------------------------------
# Wrapper
# --------------------------------------------------------------------------
def maxpool1d(x: jax.Array, kernel_size: int = 1, stride: int | None = None,
              *, force_copy: bool = False) -> jax.Array:
    """Pallas implementation of torch.nn.MaxPool1d(kernel_size, stride).

    x: (N, C, L).  Returns (N, C, L_out), L_out = (L - kernel_size)//stride + 1.
    """
    if stride is None:
        stride = kernel_size
    n, c, l = x.shape
    if kernel_size < 1 or stride < 1:
        raise ValueError("kernel_size and stride must be >= 1")
    if kernel_size > l:
        raise ValueError(f"kernel_size ({kernel_size}) exceeds input length ({l})")

    if kernel_size == 1 and stride == 1:
        # MaxPool1d(1) is the identity: zero HBM traffic unless a fresh buffer
        # is explicitly requested.
        if not force_copy:
            return x
        return _identity_copy(x)

    # ---- general path (kernel_size > 1 and/or stride > 1) ----------------
    # TODO(synk): halo-aware L-tiling for very large L (today each block holds
    # full rows of length L; fine for the module's small lengths).
    l_dense = l - kernel_size + 1
    l_out = (l - kernel_size) // stride + 1
    rows = n * c
    itemsize = jnp.dtype(x.dtype).itemsize
    align_r = _sublane_align(itemsize)

    x2 = x.reshape(rows, l)
    tile_r = _pick_row_tile(rows, (l + l_dense) * itemsize, align_r)
    grid = (rows // tile_r,)

    kernel = functools.partial(
        _sliding_max_kernel, kernel_size=kernel_size, l_dense=l_dense)
    cost = pl.CostEstimate(
        flops=(kernel_size - 1) * rows * l_dense,
        transcendentals=0,
        bytes_accessed=(rows * l + rows * l_dense) * itemsize)

    dense = pl.pallas_call(
        kernel,
        out_shape=jax.ShapeDtypeStruct((rows, l_dense), x.dtype),
        grid_spec=pltpu.PrefetchScalarGridSpec(
            num_scalar_prefetch=0,
            grid=grid,
            in_specs=[pl.BlockSpec((tile_r, l), lambda i: (i, 0))],
            out_specs=pl.BlockSpec((tile_r, l_dense), lambda i: (i, 0)),
        ),
        compiler_params=pltpu.CompilerParams(
            dimension_semantics=("parallel",),
            vmem_limit_bytes=_VMEM_LIMIT_BYTES),
        cost_estimate=cost,
    )(x2)

    dense = dense.reshape(n, c, l_dense)
    if stride == 1:
        return dense[..., :l_out]
    # Stride subsampling outside the kernel (no lane-strided loads in Pallas).
    return dense[..., ::stride][..., :l_out]


# --------------------------------------------------------------------------
# Module mirror
# --------------------------------------------------------------------------
class MaxPoolSummarizer:
    """Mirrors the PyTorch module: forward(x) = MaxPool1d(1)(x) == x."""

    def __init__(self, input_size: int, activation=None) -> None:
        # MaxPool1d(1) has no parameters; input_size / activation are unused
        # in the reference module as well.
        del input_size, activation
        self.kernel_size = 1

    def __call__(self, x: jax.Array) -> jax.Array:
        return maxpool1d(x, kernel_size=self.kernel_size, stride=self.kernel_size)


if __name__ == "__main__":
    key = jax.random.PRNGKey(0)

    # (N, C, L) = (2, 4, 16): the module's (batch, channels, length) input.
    x = jax.random.normal(key, (2, 4, 16), dtype=jnp.float32)
    model = MaxPoolSummarizer(input_size=16, activation=None)
    y = jax.block_until_ready(model(x))
    assert y.shape == x.shape, (y.shape, x.shape)
    assert jnp.allclose(y, x), "MaxPool1d(1) output must equal its input"

    # Materialized-copy Pallas path (lane-dense flattened slab) on the same input.
    y_copy = jax.block_until_ready(maxpool1d(x, kernel_size=1, stride=1, force_copy=True))
    assert y_copy.shape == x.shape
    assert jnp.allclose(y_copy, x), "Pallas identity copy must equal its input"

    # Larger, (8,128)-friendly shape exercising the tiled lane-dense copy.
    x2 = jax.random.normal(jax.random.PRNGKey(0), (2, 8, 512), dtype=jnp.float32)
    y2 = jax.block_until_ready(maxpool1d(x2, kernel_size=1, stride=1, force_copy=True))
    assert y2.shape == x2.shape
    assert jnp.allclose(y2, x2), "Pallas identity copy must equal its input"

    # General windowed-max path sanity check (kernel_size=2, stride=2).
    x3 = jax.random.normal(jax.random.PRNGKey(0), (2, 8, 256), dtype=jnp.float32)
    y3 = jax.block_until_ready(maxpool1d(x3, kernel_size=2, stride=2))
    ref3 = jnp.max(x3.reshape(2, 8, 128, 2), axis=-1)
    assert y3.shape == ref3.shape, (y3.shape, ref3.shape)
    assert jnp.allclose(y3, ref3), "windowed max mismatch"

    print("KERNEL_OK")
</pallas_src>

<mosaic_0001>
module attributes {stable_mosaic.version = 11 : i64} {
  func.func @_copy_kernel(%arg0: i32, %arg1: memref<1x128xf32, #tpu.memory_space<vmem>>, %arg2: memref<1x128xf32, #tpu.memory_space<vmem>>) attributes {dimension_semantics = [#tpu.dimension_semantics<parallel>], iteration_bounds = array<i64: 1>, scalar_prefetch = 0 : i64, scratch_operands = 0 : i64, tpu.core_type = #tpu.core_type<tc>, window_params = [{transform_indices = @transform_0, window_bounds = array<i64: 1, 128>}, {transform_indices = @transform_1, window_bounds = array<i64: 1, 128>}]} {
    %c0 = arith.constant 0 : index
    %c0_0 = arith.constant 0 : index
    %0 = vector.load %arg1[%c0, %c0_0] : memref<1x128xf32, #tpu.memory_space<vmem>>, vector<1x128xf32>
    %c0_1 = arith.constant 0 : index
    %c0_2 = arith.constant 0 : index
    %1 = vector.load %arg2[%c0_1, %c0_2] : memref<1x128xf32, #tpu.memory_space<vmem>>, vector<1x128xf32>
    tpu.vector_store %arg2[%c0_1, %c0_2], %0 {strides = array<i32>} : memref<1x128xf32, #tpu.memory_space<vmem>>, vector<1x128xf32>,
    return
  }
  func.func @transform_0(%arg0: i32) -> (i32, i32) {
    %c0_i32 = arith.constant 0 : i32
    %c0_i32_0 = arith.constant 0 : i32
    return %arg0, %c0_i32 : i32, i32
  }
  func.func @transform_1(%arg0: i32) -> (i32, i32) {
    %c0_i32 = arith.constant 0 : i32
    %c0_i32_0 = arith.constant 0 : i32
    return %arg0, %c0_i32 : i32, i32
  }
}

</mosaic_0001>

<llo_original>
// kernel: tpu_custom_call.1
$region0: #{tpu_custom_call.1}
  #allocation0 [shape = 'u32[]', space=smem, size = 0x4, offset = 0x4, fixed_abs, tag = 'smem constant byte address 0x4 - core index']
  #allocation1 [shape = 'u32[144,128]{1,0:T(1,128)}', space=vmem, size = 0x12000, scoped, tag = 'internal scratch']
  %s0 = inlined_call_operand.hbm [shape: f32[1,128], index: 0, kind: input, shape index: {}]
  %s1 = inlined_call_operand.hbm [shape: f32[1,128], index: 1, kind: output, shape index: {}]
  %s2 = sld [smem:[#allocation0]]
  $region18: #{tpu_custom_call.1} parent=0
    _
  %s4 = ssub.s32 1, %s2
  %s5 = scalar_select 0, %s4, %s2
  $region1: #{tpu_custom_call.1} parent=0
    #allocation2 [shape = 'u8[512]{0}', space=vmem, size = 0x400, scoped, tag = 'input window, operand 0, single buffered']
    #allocation3 [shape = 's32[1]{0}', space=sflag, size = 0x4, scoped, tag = 'scoped memory for tpu_custom_call.1']
    #allocation4 [shape = 's32[1]{0}', space=sflag, size = 0x4, scoped, tag = 'scoped memory for tpu_custom_call.1']
    #allocation5 [shape = 'u8[512]{0}', space=vmem, size = 0x400, scoped, tag = 'output window, operand 0, single buffered']
    %6 = vsyncpa [#allocation3], 0
    %7 = vsyncpa [#allocation4], 0
    // Predicated region
    $region2: #{tpu_custom_call.1} parent=1 // pred_check
      _
    $region3: #{tpu_custom_call.1} parent=1 // pred_check_branch
      %9 = sbr.rel (0) target = $region5
    $region4: #{tpu_custom_call.1} parent=1 // pred_region
      %s11 = ssub.s32 16, 16
      %12 = vsyncadd [#allocation3], %s11
      %s14 = sshll.u32 [#allocation2], 4
      %s15 = int_to_ptr.vmem [resolvable:$true] %s14
      %17 = dma.hbm_to_vmem [thread:$0]  %s0, 16, %s15, [#allocation3]
    $region5: #{tpu_custom_call.1} parent=1 // pred_fallthru
      _
    // Predicated region
    $region6: #{tpu_custom_call.1} parent=1 // pred_check
      _
    $region7: #{tpu_custom_call.1} parent=1 // pred_check_branch
      %19 = sbr.rel (0) target = $region9
    $region8: #{tpu_custom_call.1} parent=1 // pred_region
      %20 = dma.done [#allocation3], 16
    $region9: #{tpu_custom_call.1} parent=1 // pred_fallthru
      _
    %v21 = vld [vmem:[#allocation2] sm:$0x1]
    %22 = vst [vmem:[#allocation5] sm:$0x1] %v21
    // Predicated region
    $region10: #{tpu_custom_call.1} parent=1 // pred_check
      _
    $region11: #{tpu_custom_call.1} parent=1 // pred_check_branch
      %24 = sbr.rel (0) target = $region13
    $region12: #{tpu_custom_call.1} parent=1 // pred_region
      %s26 = ssub.s32 16, 16
      %27 = vsyncadd [#allocation4], %s26
      %s29 = sshll.u32 [#allocation5], 4
      %s30 = int_to_ptr.vmem [resolvable:$true] %s29
      %32 = dma.vmem_to_hbm [thread:$0]  %s30, 16, %s1, [#allocation4]
    $region13: #{tpu_custom_call.1} parent=1 // pred_fallthru
      _
    // Predicated region
    $region14: #{tpu_custom_call.1} parent=1 // pred_check
      _
    $region15: #{tpu_custom_call.1} parent=1 // pred_check_branch
      %34 = sbr.rel (0) target = $region17
    $region16: #{tpu_custom_call.1} parent=1 // pred_region
      %35 = dma.done [#allocation4], 16
    $region17: #{tpu_custom_call.1} parent=1 // pred_fallthru
      _
    %36 = vsyncpa [#allocation3], 1
    %37 = vsyncpa [#allocation4], 1

</llo_original>
